<compile_context>
chip_gen: v7x
topology: tpu7x:2x2x1
jax: 0.10.0
libtpu: 0.0.40
codegen_flags: <defaults>
</compile_context>

<pallas_src>
import functools

import jax
import jax.numpy as jnp
import numpy as np
from jax import lax
from jax.experimental import pallas as pl
from jax.experimental.pallas import tpu as pltpu

LN_EPS = 1e-6


# ----------------------------------------------------------------------------
# Pallas kernel: both sublayers fused, x tile stays resident in VMEM.
#   sublayer(x) = x + (gamma*(x-mean)/(std+eps)+beta + agg) @ W.T + b
# ----------------------------------------------------------------------------
def _mp_layer_kernel(x_ref, agg1_ref, agg2_ref, c_ref, w_ref, o_ref,
                     *, n_valid, mask_tail):
    x = x_ref[...]                                   # (tm, D) f32
    a1 = agg1_ref[...]                               # (tm, D) bf16
    a2 = agg2_ref[...]                               # (tm, D) bf16
    tm, d = x.shape
    inv_dm1 = 1.0 / (d - 1)                          # torch .std() is unbiased

    if mask_tail:
        # Tail block of a non-divisible grid: zero out-of-range rows so no
        # garbage flows through LN / MXU (writes to those rows are dropped
        # by Pallas anyway, this is belt-and-braces and cheap VPU work).
        base = pl.program_id(0) * tm
        row = base + lax.broadcasted_iota(jnp.int32, (tm, 1), 0)
        keep = row < n_valid
        x = jnp.where(keep, x, 0.0)
        a1 = jnp.where(keep, a1, jnp.zeros_like(a1))
        a2 = jnp.where(keep, a2, jnp.zeros_like(a2))

    # Packed constants: rows [gamma1, beta1, b1, gamma2, beta2, b2, pad, pad].
    c = c_ref[...]                                   # (8, D) f32
    g1, be1, b1 = c[0:1], c[1:2], c[2:3]
    g2, be2, b2 = c[3:4], c[4:5], c[5:6]
    w1 = w_ref[0]                                    # (D, D) bf16 == W1.T
    w2 = w_ref[1]                                    # (D, D) bf16 == W2.T

    def sublayer(xc, agg_bf16, gamma, beta, wt, bias):
        # Pre-LayerNorm (f32; eps added to std, not variance). Exact divide on
        # the (tm,1) std term -- off the critical path, keeps numerics tight.
        mean = jnp.mean(xc, axis=-1, keepdims=True)
        diff = xc - mean
        var = jnp.sum(diff * diff, axis=-1, keepdims=True) * inv_dm1
        inv = 1.0 / (jnp.sqrt(var) + LN_EPS)
        h = gamma * (diff * inv) + beta
        # message stand-in: mess(h) = h + agg (agg precomputed, x-independent).
        z = (h + agg_bf16.astype(jnp.float32)).astype(jnp.bfloat16)
        # Linear: z @ W.T with W.T pre-transposed in the wrapper -> canonical
        # (tm,K)@(K,N) contraction, bf16 operands, f32 MXU accumulation.
        y = lax.dot_general(z, wt, (((1,), (0,)), ((), ())),
                            preferred_element_type=jnp.float32) + bias
        return xc + y                                 # residual (f32)

    x = sublayer(x, a1, g1, be1, w1, b1)
    x = sublayer(x, a2, g2, be2, w2, b2)
    o_ref[...] = x.astype(o_ref.dtype)


def fused_mp_layer(x, agg1_bf16, agg2_bf16, p1, p2):
    """x: (N, D) f32; agg*: (N, D) bf16; p1/p2: dicts with w (D,D), b/gamma/beta (1,D)."""
    n, d = x.shape

    # Row tile: large (HBM-bound kernel), multiple of 8 sublanes, capped at 512.
    # At D=128 this is ~1.5 MiB of double-buffered VMEM -- far under every
    # generation's scoped limit. No wrapper-side padding: grid uses cdiv and the
    # partial tail block is masked in-kernel.
    tm = min(512, ((n + 7) // 8) * 8)
    grid = (pl.cdiv(n, tm),)
    mask_tail = (n % tm) != 0

    # Pack the six (1, D) constants into one (8, D) block (one vreg tile).
    consts = jnp.concatenate(
        [p1["gamma"], p1["beta"], p1["b"],
         p2["gamma"], p2["beta"], p2["b"],
         jnp.zeros((2, d), jnp.float32)], axis=0)

    # Pre-transposed bf16 weights, stacked into a single (2, D, D) input.
    w_stack = jnp.stack([p1["w"].T, p2["w"].T]).astype(jnp.bfloat16)

    kernel = functools.partial(_mp_layer_kernel, n_valid=n, mask_tail=mask_tail)

    row_spec = pl.BlockSpec((tm, d), lambda i: (i, 0))

    return pl.pallas_call(
        kernel,
        out_shape=jax.ShapeDtypeStruct((n, d), x.dtype),
        grid_spec=pltpu.PrefetchScalarGridSpec(
            num_scalar_prefetch=0,
            grid=grid,
            in_specs=[
                row_spec,                                    # x tile (f32)
                row_spec,                                    # bond-message agg (bf16)
                row_spec,                                    # sc-message agg (bf16)
                pl.BlockSpec((8, d), lambda i: (0, 0)),      # packed gamma/beta/bias
                pl.BlockSpec((2, d, d), lambda i: (0, 0, 0)),  # stacked W.T (bf16)
            ],
            out_specs=pl.BlockSpec((tm, d), lambda i: (i, 0)),
        ),
        compiler_params=pltpu.CompilerParams(
            dimension_semantics=("parallel",)),
    )(x, agg1_bf16, agg2_bf16, consts, w_stack)


# ----------------------------------------------------------------------------
# Parameter init (deterministic, torch-Linear-style uniform bounds)
# ----------------------------------------------------------------------------
def init_params(key, size, n_layers):
    params = []
    bound = 1.0 / np.sqrt(size)
    for i in range(2 * n_layers):
        kw, kb = jax.random.split(jax.random.fold_in(key, i))
        params.append(dict(
            w=jax.random.uniform(kw, (size, size), jnp.float32, -bound, bound),
            b=jax.random.uniform(kb, (1, size), jnp.float32, -bound, bound),
            gamma=jnp.ones((1, size), jnp.float32),
            beta=jnp.zeros((1, size), jnp.float32),
        ))
    return params


# ----------------------------------------------------------------------------
# MessagePassingLayer forward (glue around the fused Pallas kernel)
# ----------------------------------------------------------------------------
def message_passing_layer(params, x, bond_x, sc_pair_x, angles, mask,
                          bond_idx, sc_idx, angles_idx, t=0):
    del mask  # accepted but unused by the PyTorch forward as well
    n_atoms = x.shape[0]
    n_bonds = bond_x.shape[0]
    f32, bf16 = jnp.float32, jnp.bfloat16

    # x-independent aggregations as dense one-hot segment-sums (MXU matmuls,
    # no serialized scatter): angles -> bonds -> atoms, sc pairs -> atoms.
    # bf16 operands (0/1 exact) with f32 accumulation: full MXU rate, half the
    # HBM footprint of the one-hot matrices.
    ang2bond = jax.nn.one_hot(angles_idx, n_bonds, dtype=bf16)   # (n_ang, n_bonds)
    bond2atom = jax.nn.one_hot(bond_idx, n_atoms, dtype=bf16)    # (n_bonds, n_atoms)
    sc2atom = jax.nn.one_hot(sc_idx, n_atoms, dtype=bf16)        # (n_sc, n_atoms)

    cdims = (((0,), (0,)), ((), ()))   # contract dim 0 with dim 0 (== A.T @ B)
    ang_contrib = lax.dot_general(ang2bond, angles.astype(bf16), cdims,
                                  preferred_element_type=f32)    # (n_bonds, D)
    bond_feats = bond_x + ang_contrib                            # f32
    bond_agg = lax.dot_general(bond2atom, bond_feats.astype(bf16), cdims,
                               preferred_element_type=f32).astype(bf16)
    sc_agg = lax.dot_general(sc2atom, sc_pair_x.astype(bf16), cdims,
                             preferred_element_type=f32).astype(bf16)

    p1 = params[2 * t]
    p2 = params[2 * t + 1]
    return fused_mp_layer(x, bond_agg, sc_agg, p1, p2)


# ----------------------------------------------------------------------------
# Pure-JAX f32 reference (module semantics) for correctness check
# ----------------------------------------------------------------------------
def _layer_norm_ref(x, gamma, beta):
    mean = jnp.mean(x, axis=-1, keepdims=True)
    std = jnp.std(x, axis=-1, keepdims=True, ddof=1)
    return gamma * (x - mean) / (std + LN_EPS) + beta


def reference_forward(params, x, bond_x, sc_pair_x, angles, mask,
                      bond_idx, sc_idx, angles_idx, t=0):
    del mask
    bond_feats = bond_x + jnp.zeros_like(bond_x).at[angles_idx].add(angles)
    bond_agg = jnp.zeros_like(x).at[bond_idx].add(bond_feats)
    p = params[2 * t]
    h = _layer_norm_ref(x, p["gamma"], p["beta"]) + bond_agg
    x = x + h @ p["w"].T + p["b"]

    sc_agg = jnp.zeros_like(x).at[sc_idx].add(sc_pair_x)
    p = params[2 * t + 1]
    h = _layer_norm_ref(x, p["gamma"], p["beta"]) + sc_agg
    return x + h @ p["w"].T + p["b"]


# ----------------------------------------------------------------------------
if __name__ == "__main__":
    size = 128          # model hidden size
    n_layers = 1        # N in the module (we run t=0)
    n_atoms, n_bonds, n_sc, n_angles = 64, 96, 48, 80

    key = jax.random.PRNGKey(0)
    kx, kb, ks, ka, ki1, ki2, ki3, kp = jax.random.split(key, 8)

    x = jax.random.normal(kx, (n_atoms, size), jnp.float32)
    bond_x = jax.random.normal(kb, (n_bonds, size), jnp.float32)
    sc_pair_x = jax.random.normal(ks, (n_sc, size), jnp.float32)
    angles = jax.random.normal(ka, (n_angles, size), jnp.float32)
    bond_idx = jax.random.randint(ki1, (n_bonds,), 0, n_atoms)
    sc_idx = jax.random.randint(ki2, (n_sc,), 0, n_atoms)
    angles_idx = jax.random.randint(ki3, (n_angles,), 0, n_bonds)
    mask = jnp.ones((n_atoms,), jnp.float32)

    params = init_params(kp, size, n_layers)

    out = message_passing_layer(params, x, bond_x, sc_pair_x, angles, mask,
                                bond_idx, sc_idx, angles_idx, t=0)
    out = jax.block_until_ready(out)

    ref = reference_forward(params, x, bond_x, sc_pair_x, angles, mask,
                            bond_idx, sc_idx, angles_idx, t=0)
    # Tolerance accounts for bf16 MXU operands / bf16-streamed aggregations
    # (f32 accumulation everywhere); LayerNorm & residual math stays f32 with
    # an exact reciprocal.
    np.testing.assert_allclose(np.asarray(out), np.asarray(ref),
                               rtol=5e-2, atol=5e-2)
    print("KERNEL_OK")
</pallas_src>

<mosaic_0001>
module attributes {stable_mosaic.version = 11 : i64} {
  func.func @_mp_layer_kernel(%arg0: i32, %arg1: memref<64x128xf32, #tpu.memory_space<vmem>>, %arg2: memref<64x128xbf16, #tpu.memory_space<vmem>>, %arg3: memref<64x128xbf16, #tpu.memory_space<vmem>>, %arg4: memref<8x128xf32, #tpu.memory_space<vmem>>, %arg5: memref<2x128x128xbf16, #tpu.memory_space<vmem>>, %arg6: memref<64x128xf32, #tpu.memory_space<vmem>>) attributes {dimension_semantics = [#tpu.dimension_semantics<parallel>], iteration_bounds = array<i64: 1>, scalar_prefetch = 0 : i64, scratch_operands = 0 : i64, tpu.core_type = #tpu.core_type<tc>, window_params = [{transform_indices = @transform_0, window_bounds = array<i64: 64, 128>}, {transform_indices = @transform_1, window_bounds = array<i64: 64, 128>}, {transform_indices = @transform_2, window_bounds = array<i64: 64, 128>}, {pipeline_mode = #tpu.pipeline_mode<synchronous>, transform_indices = @transform_3, window_bounds = array<i64: 8, 128>}, {pipeline_mode = #tpu.pipeline_mode<synchronous>, transform_indices = @transform_4, window_bounds = array<i64: 2, 128, 128>}, {transform_indices = @transform_5, window_bounds = array<i64: 64, 128>}]} {
    %c0 = arith.constant 0 : index
    %c0_0 = arith.constant 0 : index
    %0 = vector.load %arg1[%c0, %c0_0] : memref<64x128xf32, #tpu.memory_space<vmem>>, vector<64x128xf32>
    %c0_1 = arith.constant 0 : index
    %c0_2 = arith.constant 0 : index
    %1 = vector.load %arg2[%c0_1, %c0_2] : memref<64x128xbf16, #tpu.memory_space<vmem>>, vector<64x128xbf16>
    %c0_3 = arith.constant 0 : index
    %c0_4 = arith.constant 0 : index
    %2 = vector.load %arg3[%c0_3, %c0_4] : memref<64x128xbf16, #tpu.memory_space<vmem>>, vector<64x128xbf16>
    %c0_5 = arith.constant 0 : index
    %c0_6 = arith.constant 0 : index
    %3 = vector.load %arg4[%c0_5, %c0_6] : memref<8x128xf32, #tpu.memory_space<vmem>>, vector<8x128xf32>
    %4 = vector.extract_strided_slice %3 {offsets = [0, 0], sizes = [1, 128], strides = [1, 1]} : vector<8x128xf32> to vector<1x128xf32>
    %5 = vector.extract_strided_slice %3 {offsets = [1, 0], sizes = [1, 128], strides = [1, 1]} : vector<8x128xf32> to vector<1x128xf32>
    %6 = vector.extract_strided_slice %3 {offsets = [2, 0], sizes = [1, 128], strides = [1, 1]} : vector<8x128xf32> to vector<1x128xf32>
    %7 = vector.extract_strided_slice %3 {offsets = [3, 0], sizes = [1, 128], strides = [1, 1]} : vector<8x128xf32> to vector<1x128xf32>
    %8 = vector.extract_strided_slice %3 {offsets = [4, 0], sizes = [1, 128], strides = [1, 1]} : vector<8x128xf32> to vector<1x128xf32>
    %9 = vector.extract_strided_slice %3 {offsets = [5, 0], sizes = [1, 128], strides = [1, 1]} : vector<8x128xf32> to vector<1x128xf32>
    %c0_7 = arith.constant 0 : index
    %c0_8 = arith.constant 0 : index
    %c0_9 = arith.constant 0 : index
    %10 = vector.load %arg5[%c0_7, %c0_8, %c0_9] : memref<2x128x128xbf16, #tpu.memory_space<vmem>>, vector<1x128x128xbf16>
    %11 = vector.shape_cast %10 : vector<1x128x128xbf16> to vector<128x128xbf16>
    %c1 = arith.constant 1 : index
    %c0_10 = arith.constant 0 : index
    %c0_11 = arith.constant 0 : index
    %12 = vector.load %arg5[%c1, %c0_10, %c0_11] : memref<2x128x128xbf16, #tpu.memory_space<vmem>>, vector<1x128x128xbf16>
    %13 = vector.shape_cast %12 : vector<1x128x128xbf16> to vector<128x128xbf16>
    %cst = arith.constant dense<0.000000e+00> : vector<64xf32>
    %14 = vector.multi_reduction <add>, %0, %cst [1] : vector<64x128xf32> to vector<64xf32>
    %15 = vector.shape_cast %14 : vector<64xf32> to vector<64x1xf32>
    %cst_12 = arith.constant 1.280000e+02 : f32
    %16 = vector.broadcast %cst_12 : f32 to vector<64x1xf32>
    %17 = arith.divf %15, %16 : vector<64x1xf32>
    %18 = vector.broadcast %17 : vector<64x1xf32> to vector<64x128xf32>
    %19 = arith.subf %0, %18 : vector<64x128xf32>
    %20 = arith.mulf %19, %19 : vector<64x128xf32>
    %cst_13 = arith.constant dense<0.000000e+00> : vector<64xf32>
    %21 = vector.multi_reduction <add>, %20, %cst_13 [1] : vector<64x128xf32> to vector<64xf32>
    %22 = vector.shape_cast %21 : vector<64xf32> to vector<64x1xf32>
    %cst_14 = arith.constant 0.00787401571 : f32
    %23 = vector.broadcast %cst_14 : f32 to vector<64x1xf32>
    %24 = arith.mulf %22, %23 : vector<64x1xf32>
    %25 = math.sqrt %24 : vector<64x1xf32>
    %cst_15 = arith.constant 9.99999997E-7 : f32
    %26 = vector.broadcast %cst_15 : f32 to vector<64x1xf32>
    %27 = arith.addf %25, %26 : vector<64x1xf32>
    %cst_16 = arith.constant 1.000000e+00 : f32
    %28 = vector.broadcast %cst_16 : f32 to vector<64x1xf32>
    %29 = arith.divf %28, %27 : vector<64x1xf32>
    %30 = vector.broadcast %29 : vector<64x1xf32> to vector<64x128xf32>
    %31 = arith.mulf %19, %30 : vector<64x128xf32>
    %32 = vector.broadcast %4 : vector<1x128xf32> to vector<64x128xf32>
    %33 = arith.mulf %32, %31 : vector<64x128xf32>
    %34 = vector.broadcast %5 : vector<1x128xf32> to vector<64x128xf32>
    %35 = arith.addf %33, %34 : vector<64x128xf32>
    %36 = arith.extf %1 : vector<64x128xbf16> to vector<64x128xf32>
    %37 = arith.addf %35, %36 : vector<64x128xf32>
    %38 = arith.truncf %37 : vector<64x128xf32> to vector<64x128xbf16>
    %cst_17 = arith.constant dense<0.000000e+00> : vector<64x128xf32>
    %39 = tpu.matmul %38, %11, %cst_17 {dimension_numbers = #tpu.dot_dimension_numbers<[1], [0], [0], [1], [0, 0, 1, 1], [], []>} : vector<64x128xbf16>, vector<128x128xbf16>, vector<64x128xf32> -> vector<64x128xf32>
    %40 = vector.broadcast %6 : vector<1x128xf32> to vector<64x128xf32>
    %41 = arith.addf %39, %40 : vector<64x128xf32>
    %42 = arith.addf %0, %41 : vector<64x128xf32>
    %cst_18 = arith.constant dense<0.000000e+00> : vector<64xf32>
    %43 = vector.multi_reduction <add>, %42, %cst_18 [1] : vector<64x128xf32> to vector<64xf32>
    %44 = vector.shape_cast %43 : vector<64xf32> to vector<64x1xf32>
    %cst_19 = arith.constant 1.280000e+02 : f32
    %45 = vector.broadcast %cst_19 : f32 to vector<64x1xf32>
    %46 = arith.divf %44, %45 : vector<64x1xf32>
    %47 = vector.broadcast %46 : vector<64x1xf32> to vector<64x128xf32>
    %48 = arith.subf %42, %47 : vector<64x128xf32>
    %49 = arith.mulf %48, %48 : vector<64x128xf32>
    %cst_20 = arith.constant dense<0.000000e+00> : vector<64xf32>
    %50 = vector.multi_reduction <add>, %49, %cst_20 [1] : vector<64x128xf32> to vector<64xf32>
    %51 = vector.shape_cast %50 : vector<64xf32> to vector<64x1xf32>
    %cst_21 = arith.constant 0.00787401571 : f32
    %52 = vector.broadcast %cst_21 : f32 to vector<64x1xf32>
    %53 = arith.mulf %51, %52 : vector<64x1xf32>
    %54 = math.sqrt %53 : vector<64x1xf32>
    %cst_22 = arith.constant 9.99999997E-7 : f32
    %55 = vector.broadcast %cst_22 : f32 to vector<64x1xf32>
    %56 = arith.addf %54, %55 : vector<64x1xf32>
    %cst_23 = arith.constant 1.000000e+00 : f32
    %57 = vector.broadcast %cst_23 : f32 to vector<64x1xf32>
    %58 = arith.divf %57, %56 : vector<64x1xf32>
    %59 = vector.broadcast %58 : vector<64x1xf32> to vector<64x128xf32>
    %60 = arith.mulf %48, %59 : vector<64x128xf32>
    %61 = vector.broadcast %7 : vector<1x128xf32> to vector<64x128xf32>
    %62 = arith.mulf %61, %60 : vector<64x128xf32>
    %63 = vector.broadcast %8 : vector<1x128xf32> to vector<64x128xf32>
    %64 = arith.addf %62, %63 : vector<64x128xf32>
    %65 = arith.extf %2 : vector<64x128xbf16> to vector<64x128xf32>
    %66 = arith.addf %64, %65 : vector<64x128xf32>
    %67 = arith.truncf %66 : vector<64x128xf32> to vector<64x128xbf16>
    %cst_24 = arith.constant dense<0.000000e+00> : vector<64x128xf32>
    %68 = tpu.matmul %67, %13, %cst_24 {dimension_numbers = #tpu.dot_dimension_numbers<[1], [0], [0], [1], [0, 0, 1, 1], [], []>} : vector<64x128xbf16>, vector<128x128xbf16>, vector<64x128xf32> -> vector<64x128xf32>
    %69 = vector.broadcast %9 : vector<1x128xf32> to vector<64x128xf32>
    %70 = arith.addf %68, %69 : vector<64x128xf32>
    %71 = arith.addf %42, %70 : vector<64x128xf32>
    %c0_25 = arith.constant 0 : index
    %c0_26 = arith.constant 0 : index
    %72 = vector.load %arg6[%c0_25, %c0_26] : memref<64x128xf32, #tpu.memory_space<vmem>>, vector<64x128xf32>
    tpu.vector_store %arg6[%c0_25, %c0_26], %71 {strides = array<i32>} : memref<64x128xf32, #tpu.memory_space<vmem>>, vector<64x128xf32>,
    return
  }
  func.func @transform_0(%arg0: i32) -> (i32, i32) {
    %c0_i32 = arith.constant 0 : i32
    %c0_i32_0 = arith.constant 0 : i32
    return %arg0, %c0_i32 : i32, i32
  }
  func.func @transform_1(%arg0: i32) -> (i32, i32) {
    %c0_i32 = arith.constant 0 : i32
    %c0_i32_0 = arith.constant 0 : i32
    return %arg0, %c0_i32 : i32, i32
  }
  func.func @transform_2(%arg0: i32) -> (i32, i32) {
    %c0_i32 = arith.constant 0 : i32
    %c0_i32_0 = arith.constant 0 : i32
    return %arg0, %c0_i32 : i32, i32
  }
  func.func @transform_3(%arg0: i32) -> (i32, i32) {
    %c0_i32 = arith.constant 0 : i32
    %c0_i32_0 = arith.constant 0 : i32
    %c0_i32_1 = arith.constant 0 : i32
    return %c0_i32, %c0_i32_0 : i32, i32
  }
  func.func @transform_4(%arg0: i32) -> (i32, i32, i32) {
    %c0_i32 = arith.constant 0 : i32
    %c0_i32_0 = arith.constant 0 : i32
    %c0_i32_1 = arith.constant 0 : i32
    %c0_i32_2 = arith.constant 0 : i32
    return %c0_i32, %c0_i32_0, %c0_i32_1 : i32, i32, i32
  }
  func.func @transform_5(%arg0: i32) -> (i32, i32) {
    %c0_i32 = arith.constant 0 : i32
    %c0_i32_0 = arith.constant 0 : i32
    return %arg0, %c0_i32 : i32, i32
  }
}

</mosaic_0001>

<llo_original>
// kernel: tpu_custom_call.1
$region0: #{tpu_custom_call.1}
  #allocation0 [shape = 'u32[]', space=smem, size = 0x4, offset = 0x4, fixed_abs, tag = 'smem constant byte address 0x4 - core index']
  #allocation1 [shape = 'u32[144,128]{1,0:T(1,128)}', space=vmem, size = 0x12000, scoped, tag = 'internal scratch']
  %s0 = inlined_call_operand.hbm [shape: f32[64,128], index: 0, kind: input, shape index: {}]
  %s1 = inlined_call_operand.hbm [shape: bf16[64,128], index: 1, kind: input, shape index: {}]
  %s2 = inlined_call_operand.hbm [shape: bf16[64,128], index: 2, kind: input, shape index: {}]
  %s3 = inlined_call_operand.vmem [shape: f32[8,128], index: 3, kind: input, shape index: {}]
  %s4 = inlined_call_operand.hbm [shape: bf16[2,128,128], index: 4, kind: input, shape index: {}]
  %s5 = inlined_call_operand.hbm [shape: f32[64,128], index: 5, kind: output, shape index: {}]
  %s6 = sld [smem:[#allocation0]]
  $region46: #{tpu_custom_call.1} parent=0
    _
  %s8 = ssub.s32 1, %s6
  %s9 = scalar_select 0, %s8, %s6
  $region1: #{tpu_custom_call.1} parent=0
    #allocation2 [shape = 'u8[32768]{0}', space=vmem, size = 0x8000, scoped, tag = 'input window, operand 0, single buffered']
    #allocation3 [shape = 's32[1]{0}', space=sflag, size = 0x4, scoped, tag = 'scoped memory for tpu_custom_call.1']
    #allocation4 [shape = 's32[1]{0}', space=sflag, size = 0x4, scoped, tag = 'scoped memory for tpu_custom_call.1']
    #allocation5 [shape = 'u8[16384]{0}', space=vmem, size = 0x4000, scoped, tag = 'input window, operand 1, single buffered']
    #allocation6 [shape = 's32[1]{0}', space=sflag, size = 0x4, scoped, tag = 'scoped memory for tpu_custom_call.1']
    #allocation7 [shape = 'u8[16384]{0}', space=vmem, size = 0x4000, scoped, tag = 'input window, operand 2, single buffered']
    #allocation8 [shape = 'u8[65536]{0}', space=vmem, size = 0x10000, scoped, tag = 'input window, operand 4, single buffered']
    #allocation9 [shape = 's32[1]{0}', space=sflag, size = 0x4, scoped, tag = 'scoped memory for tpu_custom_call.1']
    #allocation10 [shape = 'u8[32768]{0}', space=vmem, size = 0x8000, scoped, tag = 'output window, operand 0, single buffered']
    %10 = vsyncpa [#allocation3], 0
    %11 = vsyncpa [#allocation6], 0
    %12 = vsyncpa [#allocation9], 0
    %13 = vsyncpa [#allocation4], 0
    // Predicated region
    $region2: #{tpu_custom_call.1} parent=1 // pred_check
      _
    $region3: #{tpu_custom_call.1} parent=1 // pred_check_branch
      %15 = sbr.rel (0) target = $region5
    $region4: #{tpu_custom_call.1} parent=1 // pred_region
      %s17 = ssub.s32 1024, 1024
      %18 = vsyncadd [#allocation3], %s17
      %s19 = sshll.u32 [#allocation2], 4
      %s20 = int_to_ptr.vmem [resolvable:$true] %s19
      %25 = dma.hbm_to_vmem [thread:$0]  %s0, 1024, %s20, [#allocation3], 128, 128, 8
    $region5: #{tpu_custom_call.1} parent=1 // pred_fallthru
      _
    // Predicated region
    $region6: #{tpu_custom_call.1} parent=1 // pred_check
      _
    $region7: #{tpu_custom_call.1} parent=1 // pred_check_branch
      %27 = sbr.rel (0) target = $region9
    $region8: #{tpu_custom_call.1} parent=1 // pred_region
      %s29 = ssub.s32 512, 512
      %30 = vsyncadd [#allocation6], %s29
      %s31 = sshll.u32 [#allocation5], 4
      %s32 = int_to_ptr.vmem [resolvable:$true] %s31
      %37 = dma.hbm_to_vmem [thread:$0]  %s1, 512, %s32, [#allocation6], 64, 64, 4
    $region9: #{tpu_custom_call.1} parent=1 // pred_fallthru
      _
    // Predicated region
    $region10: #{tpu_custom_call.1} parent=1 // pred_check
      _
    $region11: #{tpu_custom_call.1} parent=1 // pred_check_branch
      %39 = sbr.rel (0) target = $region13
    $region12: #{tpu_custom_call.1} parent=1 // pred_region
      %s41 = ssub.s32 512, 512
      %42 = vsyncadd [#allocation6], %s41
      %s43 = sshll.u32 [#allocation7], 4
      %s44 = int_to_ptr.vmem [resolvable:$true] %s43
      %49 = dma.hbm_to_vmem [thread:$0]  %s2, 512, %s44, [#allocation6], 64, 64, 4
    $region13: #{tpu_custom_call.1} parent=1 // pred_fallthru
      _
    // Predicated region
    $region14: #{tpu_custom_call.1} parent=1 // pred_check
      _
    $region15: #{tpu_custom_call.1} parent=1 // pred_check_branch
      %51 = sbr.rel (0) target = $region17
    $region16: #{tpu_custom_call.1} parent=1 // pred_region
      _
    $region17: #{tpu_custom_call.1} parent=1 // pred_fallthru
      _
    // Predicated region
    $region18: #{tpu_custom_call.1} parent=1 // pred_check
      _
    $region19: #{tpu_custom_call.1} parent=1 // pred_check_branch
      %53 = sbr.rel (0) target = $region21
    $region20: #{tpu_custom_call.1} parent=1 // pred_region
      %s55 = ssub.s32 2048, 2048
      %56 = vsyncadd [#allocation9], %s55
      %s57 = sshll.u32 [#allocation8], 4
      %s58 = int_to_ptr.vmem [resolvable:$true] %s57
      %63 = dma.hbm_to_vmem [thread:$0]  %s4, 2048, %s58, [#allocation9], 64, 64, 4
    $region21: #{tpu_custom_call.1} parent=1 // pred_fallthru
      _
    // Predicated region
    $region22: #{tpu_custom_call.1} parent=1 // pred_check
      _
    $region23: #{tpu_custom_call.1} parent=1 // pred_check_branch
      %65 = sbr.rel (0) target = $region25
    $region24: #{tpu_custom_call.1} parent=1 // pred_region
      %66 = dma.done [#allocation3], 1024
    $region25: #{tpu_custom_call.1} parent=1 // pred_fallthru
      _
    // Predicated region
    $region26: #{tpu_custom_call.1} parent=1 // pred_check
      _
    $region27: #{tpu_custom_call.1} parent=1 // pred_check_branch
      %68 = sbr.rel (0) target = $region29
    $region28: #{tpu_custom_call.1} parent=1 // pred_region
      %69 = dma.done [#allocation6], 512
    $region29: #{tpu_custom_call.1} parent=1 // pred_fallthru
      _
    // Predicated region
    $region30: #{tpu_custom_call.1} parent=1 // pred_check
      _
    $region31: #{tpu_custom_call.1} parent=1 // pred_check_branch
      %71 = sbr.rel (0) target = $region33
    $region32: #{tpu_custom_call.1} parent=1 // pred_region
      %72 = dma.done [#allocation6], 512
    $region33: #{tpu_custom_call.1} parent=1 // pred_fallthru
      _
    // Predicated region
    $region34: #{tpu_custom_call.1} parent=1 // pred_check
      _
    $region35: #{tpu_custom_call.1} parent=1 // pred_check_branch
      %74 = sbr.rel (0) target = $region37
    $region36: #{tpu_custom_call.1} parent=1 // pred_region
      %75 = dma.done [#allocation9], 2048
    $region37: #{tpu_custom_call.1} parent=1 // pred_fallthru
      _
    %v77 = vld [vmem:[#allocation2] sm:$0xff]
    %v78 = vld [vmem:[#allocation2 + $0x8] sm:$0xff]
    %v79 = vld [vmem:[#allocation2 + $0x10] sm:$0xff]
    %v80 = vld [vmem:[#allocation2 + $0x18] sm:$0xff]
    %v81 = vld [vmem:[#allocation2 + $0x20] sm:$0xff]
    %v82 = vld [vmem:[#allocation2 + $0x28] sm:$0xff]
    %v83 = vld [vmem:[#allocation2 + $0x30] sm:$0xff]
    %v84 = vld [vmem:[#allocation2 + $0x38] sm:$0xff]
    %v85 = vld [vmem:[#allocation5] sm:$0xf]
    %v86 = vld [vmem:[#allocation5 + $0x4] sm:$0xf]
    %v87 = vld [vmem:[#allocation5 + $0x8] sm:$0xf]
    %v88 = vld [vmem:[#allocation5 + $0xc] sm:$0xf]
    %v89 = vld [vmem:[#allocation5 + $0x10] sm:$0xf]
    %v90 = vld [vmem:[#allocation5 + $0x14] sm:$0xf]
    %v91 = vld [vmem:[#allocation5 + $0x18] sm:$0xf]
    %v92 = vld [vmem:[#allocation5 + $0x1c] sm:$0xf]
    %v93 = vld [vmem:[#allocation7] sm:$0xf]
    %v94 = vld [vmem:[#allocation7 + $0x4] sm:$0xf]
    %v95 = vld [vmem:[#allocation7 + $0x8] sm:$0xf]
    %v96 = vld [vmem:[#allocation7 + $0xc] sm:$0xf]
    %v97 = vld [vmem:[#allocation7 + $0x10] sm:$0xf]
    %v98 = vld [vmem:[#allocation7 + $0x14] sm:$0xf]
    %v99 = vld [vmem:[#allocation7 + $0x18] sm:$0xf]
    %v100 = vld [vmem:[#allocation7 + $0x1c] sm:$0xf]
    %v101 = vld [vmem:[%s3] sm:$0xff]
    %v102 = vld [vmem:[#allocation8] sm:$0xf]
    %v103 = vld [vmem:[#allocation8 + $0x4] sm:$0xf]
    %v104 = vld [vmem:[#allocation8 + $0x8] sm:$0xf]
    %v105 = vld [vmem:[#allocation8 + $0xc] sm:$0xf]
    %v106 = vld [vmem:[#allocation8 + $0x10] sm:$0xf]
    %v107 = vld [vmem:[#allocation8 + $0x14] sm:$0xf]
    %v108 = vld [vmem:[#allocation8 + $0x18] sm:$0xf]
    %v109 = vld [vmem:[#allocation8 + $0x1c] sm:$0xf]
    %v110 = vld [vmem:[#allocation8 + $0x20] sm:$0xf]
    %v111 = vld [vmem:[#allocation8 + $0x24] sm:$0xf]
    %v112 = vld [vmem:[#allocation8 + $0x28] sm:$0xf]
    %v113 = vld [vmem:[#allocation8 + $0x2c] sm:$0xf]
    %v114 = vld [vmem:[#allocation8 + $0x30] sm:$0xf]
    %v115 = vld [vmem:[#allocation8 + $0x34] sm:$0xf]
    %v116 = vld [vmem:[#allocation8 + $0x38] sm:$0xf]
    %v117 = vld [vmem:[#allocation8 + $0x3c] sm:$0xf]
    %s118 = scalar_lea.vmem [#allocation8], 64
    %v119 = vld [vmem:[%s118] sm:$0xf]
    %v120 = vld [vmem:[%s118 + $0x4] sm:$0xf]
    %v121 = vld [vmem:[%s118 + $0x8] sm:$0xf]
    %v122 = vld [vmem:[%s118 + $0xc] sm:$0xf]
    %v123 = vld [vmem:[%s118 + $0x10] sm:$0xf]
    %v124 = vld [vmem:[%s118 + $0x14] sm:$0xf]
    %v125 = vld [vmem:[%s118 + $0x18] sm:$0xf]
    %v126 = vld [vmem:[%s118 + $0x1c] sm:$0xf]
    %v127 = vld [vmem:[%s118 + $0x20] sm:$0xf]
    %v128 = vld [vmem:[%s118 + $0x24] sm:$0xf]
    %v129 = vld [vmem:[%s118 + $0x28] sm:$0xf]
    %v130 = vld [vmem:[%s118 + $0x2c] sm:$0xf]
    %v131 = vld [vmem:[%s118 + $0x30] sm:$0xf]
    %v132 = vld [vmem:[%s118 + $0x34] sm:$0xf]
    %v133 = vld [vmem:[%s118 + $0x38] sm:$0xf]
    %v134 = vld [vmem:[%s118 + $0x3c] sm:$0xf]
    %135 = vadd.xlane.f32.xlu0 %v77
    %v136 = vpop.xlane.xlu0 %135
    %137 = vadd.xlane.f32.xlu0 %v78
    %v138 = vpop.xlane.xlu0 %137
    %139 = vadd.xlane.f32.xlu0 %v79
    %v140 = vpop.xlane.xlu0 %139
    %141 = vadd.xlane.f32.xlu0 %v80
    %v142 = vpop.xlane.xlu0 %141
    %143 = vadd.xlane.f32.xlu0 %v81
    %v144 = vpop.xlane.xlu0 %143
    %145 = vadd.xlane.f32.xlu0 %v82
    %v146 = vpop.xlane.xlu0 %145
    %147 = vadd.xlane.f32.xlu0 %v83
    %v148 = vpop.xlane.xlu0 %147
    %149 = vadd.xlane.f32.xlu0 %v84
    %v150 = vpop.xlane.xlu0 %149
    %v151 = vrcp.pop 128.0
    %v152 = vmul.f32 %v136, %v151
    %v153 = vmul.f32 %v138, %v151
    %v154 = vmul.f32 %v140, %v151
    %v155 = vmul.f32 %v142, %v151
    %v156 = vmul.f32 %v144, %v151
    %v157 = vmul.f32 %v146, %v151
    %v158 = vmul.f32 %v148, %v151
    %v159 = vmul.f32 %v150, %v151
    %v160 = vsub.f32 %v77, %v152
    %v161 = vsub.f32 %v78, %v153
    %v162 = vsub.f32 %v79, %v154
    %v163 = vsub.f32 %v80, %v155
    %v164 = vsub.f32 %v81, %v156
    %v165 = vsub.f32 %v82, %v157
    %v166 = vsub.f32 %v83, %v158
    %v167 = vsub.f32 %v84, %v159
    %v168 = vmul.f32 %v160, %v160
    %v169 = vmul.f32 %v161, %v161
    %v170 = vmul.f32 %v162, %v162
    %v171 = vmul.f32 %v163, %v163
    %v172 = vmul.f32 %v164, %v164
    %v173 = vmul.f32 %v165, %v165
    %v174 = vmul.f32 %v166, %v166
    %v175 = vmul.f32 %v167, %v167
    %176 = vadd.xlane.f32.xlu0 %v168
    %v177 = vpop.xlane.xlu0 %176
    %178 = vadd.xlane.f32.xlu0 %v169
    %v179 = vpop.xlane.xlu0 %178
    %180 = vadd.xlane.f32.xlu0 %v170
    %v181 = vpop.xlane.xlu0 %180
    %182 = vadd.xlane.f32.xlu0 %v171
    %v183 = vpop.xlane.xlu0 %182
    %184 = vadd.xlane.f32.xlu0 %v172
    %v185 = vpop.xlane.xlu0 %184
    %186 = vadd.xlane.f32.xlu0 %v173
    %v187 = vpop.xlane.xlu0 %186
    %188 = vadd.xlane.f32.xlu0 %v174
    %v189 = vpop.xlane.xlu0 %188
    %190 = vadd.xlane.f32.xlu0 %v175
    %v191 = vpop.xlane.xlu0 %190
    %v192 = vmul.f32 %v177, 0.007874016
    %v193 = vmul.f32 %v179, 0.007874016
    %v194 = vmul.f32 %v181, 0.007874016
    %v195 = vmul.f32 %v183, 0.007874016
    %v196 = vmul.f32 %v185, 0.007874016
    %v197 = vmul.f32 %v187, 0.007874016
    %v198 = vmul.f32 %v189, 0.007874016
    %v199 = vmul.f32 %v191, 0.007874016
    %v200 = vrsqrt.pop %v192
    %v201 = vmul.f32 %v192, %v200
    %vm202 = vcmp.eq.f32.partialorder %v192, inf
    %v203 = vsel %vm202, %v192, %v201
    %vm204 = vcmp.eq.f32.partialorder %v192, 0.0
    %v205 = vand.u32 %v192, 2147483648
    %v206 = vsel %vm204, %v205, %v203
    %v207 = vrsqrt.pop %v193
    %v208 = vmul.f32 %v193, %v207
    %vm209 = vcmp.eq.f32.partialorder %v193, inf
    %v210 = vsel %vm209, %v193, %v208
    %vm211 = vcmp.eq.f32.partialorder %v193, 0.0
    %v212 = vand.u32 %v193, 2147483648
    %v213 = vsel %vm211, %v212, %v210
    %v214 = vrsqrt.pop %v194
    %v215 = vmul.f32 %v194, %v214
    %vm216 = vcmp.eq.f32.partialorder %v194, inf
    %v217 = vsel %vm216, %v194, %v215
    %vm218 = vcmp.eq.f32.partialorder %v194, 0.0
    %v219 = vand.u32 %v194, 2147483648
    %v220 = vsel %vm218, %v219, %v217
    %v221 = vrsqrt.pop %v195
    %v222 = vmul.f32 %v195, %v221
    %vm223 = vcmp.eq.f32.partialorder %v195, inf
    %v224 = vsel %vm223, %v195, %v222
    %vm225 = vcmp.eq.f32.partialorder %v195, 0.0
    %v226 = vand.u32 %v195, 2147483648
    %v227 = vsel %vm225, %v226, %v224
    %v228 = vrsqrt.pop %v196
    %v229 = vmul.f32 %v196, %v228
    %vm230 = vcmp.eq.f32.partialorder %v196, inf
    %v231 = vsel %vm230, %v196, %v229
    %vm232 = vcmp.eq.f32.partialorder %v196, 0.0
    %v233 = vand.u32 %v196, 2147483648
    %v234 = vsel %vm232, %v233, %v231
    %v235 = vrsqrt.pop %v197
    %v236 = vmul.f32 %v197, %v235
    %vm237 = vcmp.eq.f32.partialorder %v197, inf
    %v238 = vsel %vm237, %v197, %v236
    %vm239 = vcmp.eq.f32.partialorder %v197, 0.0
    %v240 = vand.u32 %v197, 2147483648
    %v241 = vsel %vm239, %v240, %v238
    %v242 = vrsqrt.pop %v198
    %v243 = vmul.f32 %v198, %v242
    %vm244 = vcmp.eq.f32.partialorder %v198, inf
    %v245 = vsel %vm244, %v198, %v243
    %vm246 = vcmp.eq.f32.partialorder %v198, 0.0
    %v247 = vand.u32 %v198, 2147483648
    %v248 = vsel %vm246, %v247, %v245
    %v249 = vrsqrt.pop %v199
    %v250 = vmul.f32 %v199, %v249
    %vm251 = vcmp.eq.f32.partialorder %v199, inf
    %v252 = vsel %vm251, %v199, %v250
    %vm253 = vcmp.eq.f32.partialorder %v199, 0.0
    %v254 = vand.u32 %v199, 2147483648
    %v255 = vsel %vm253, %v254, %v252
    %v256 = vadd.f32 %v206, 1e-06
    %v257 = vadd.f32 %v213, 1e-06
    %v258 = vadd.f32 %v220, 1e-06
    %v259 = vadd.f32 %v227, 1e-06
    %v260 = vadd.f32 %v234, 1e-06
    %v261 = vadd.f32 %v241, 1e-06
    %v262 = vadd.f32 %v248, 1e-06
    %v263 = vadd.f32 %v255, 1e-06
    %v264 = vrcp.pop %v256
    %v265 = vmul.f32 1.0, %v264
    %v266 = vrcp.pop %v257
    %v267 = vmul.f32 1.0, %v266
    %v268 = vrcp.pop %v258
    %v269 = vmul.f32 1.0, %v268
    %v270 = vrcp.pop %v259
    %v271 = vmul.f32 1.0, %v270
    %v272 = vrcp.pop %v260
    %v273 = vmul.f32 1.0, %v272
    %v274 = vrcp.pop %v261
    %v275 = vmul.f32 1.0, %v274
    %v276 = vrcp.pop %v262
    %v277 = vmul.f32 1.0, %v276
    %v278 = vrcp.pop %v263
    %v279 = vmul.f32 1.0, %v278
    %v280 = vmul.f32 %v160, %v265
    %v281 = vmul.f32 %v161, %v267
    %v282 = vmul.f32 %v162, %v269
    %v283 = vmul.f32 %v163, %v271
    %v284 = vmul.f32 %v164, %v273
    %v285 = vmul.f32 %v165, %v275
    %v286 = vmul.f32 %v166, %v277
    %v287 = vmul.f32 %v167, %v279
    %v288 = vlaneseq
    %v289 = vshrl.u32 %v288, 7
    %v290 = vsub.s32 0, %v289
    %v291 = vrot.slane %v101, %v290
    %v292 = vmul.f32 %v291, %v280
    %v293 = vmul.f32 %v291, %v281
    %v294 = vmul.f32 %v291, %v282
    %v295 = vmul.f32 %v291, %v283
    %v296 = vmul.f32 %v291, %v284
    %v297 = vmul.f32 %v291, %v285
    %v298 = vmul.f32 %v291, %v286
    %v299 = vmul.f32 %v291, %v287
    %v300 = vlaneseq
    %v301 = vshrl.u32 %v300, 7
    %v302 = vsub.s32 1, %v301
    %v303 = vrot.slane %v101, %v302
    %v304 = vadd.f32 %v292, %v303
    %v305 = vadd.f32 %v293, %v303
    %v306 = vadd.f32 %v294, %v303
    %v307 = vadd.f32 %v295, %v303
    %v308 = vadd.f32 %v296, %v303
    %v309 = vadd.f32 %v297, %v303
    %v310 = vadd.f32 %v298, %v303
    %v311 = vadd.f32 %v299, %v303
    %v312 = vunpack.c.l.bf16 %v85
    %v313 = vunpack.c.l.bf16 %v86
    %v314 = vunpack.c.l.bf16 %v87
    %v315 = vunpack.c.l.bf16 %v88
    %v316 = vunpack.c.l.bf16 %v89
    %v317 = vunpack.c.l.bf16 %v90
    %v318 = vunpack.c.l.bf16 %v91
    %v319 = vunpack.c.l.bf16 %v92
    %v320 = vadd.f32 %v304, %v312
    %v321 = vadd.f32 %v305, %v313
    %v322 = vadd.f32 %v306, %v314
    %v323 = vadd.f32 %v307, %v315
    %v324 = vadd.f32 %v308, %v316
    %v325 = vadd.f32 %v309, %v317
    %v326 = vadd.f32 %v310, %v318
    %v327 = vadd.f32 %v311, %v319
    %v328 = vpack.c.bf16 %v321, %v320
    %v329 = vpack.c.bf16 %v323, %v322
    %v330 = vpack.c.bf16 %v325, %v324
    %v331 = vpack.c.bf16 %v327, %v326
    %v332 = vlaneseq
    %v333 = vshrl.u32 %v332, 7
    %v334 = vsub.s32 2, %v333
    %v335 = vrot.slane %v101, %v334
    %v352 = vunpack.c.l.b16 %v102
    %v353 = vunpack.c.l.b16 %v103
    %v354 = vunpack.c.l.b16 %v104
    %v355 = vunpack.c.l.b16 %v105
    %v356 = vunpack.c.l.b16 %v106
    %v357 = vunpack.c.l.b16 %v107
    %v358 = vunpack.c.l.b16 %v108
    %v359 = vunpack.c.l.b16 %v109
    %v360 = vunpack.c.l.b16 %v110
    %v361 = vunpack.c.l.b16 %v111
    %v362 = vunpack.c.l.b16 %v112
    %v363 = vunpack.c.l.b16 %v113
    %v364 = vunpack.c.l.b16 %v114
    %v365 = vunpack.c.l.b16 %v115
    %v366 = vunpack.c.l.b16 %v116
    %v367 = vunpack.c.l.b16 %v117
    %v368 = vpack.c.b16 %v353, %v352
    %v369 = vpack.c.b16 %v355, %v354
    %v370 = vpack.c.b16 %v357, %v356
    %v371 = vpack.c.b16 %v359, %v358
    %v372 = vpack.c.b16 %v361, %v360
    %v373 = vpack.c.b16 %v363, %v362
    %v374 = vpack.c.b16 %v365, %v364
    %v375 = vpack.c.b16 %v367, %v366
    %384 = vmatprep.subr.bf16.mxu0 0
    %385 = vmatpush1.bf16.msra.mxu0 %v368
    %386 = vmatprep.subr.bf16.mxu0 0
    %387 = vmatpush1.bf16.msra.mxu0 %v369
    %388 = vmatprep.subr.bf16.mxu0 0
    %389 = vmatpush1.bf16.msra.mxu0 %v370
    %390 = vmatprep.subr.bf16.mxu0 0
    %391 = vmatpush1.bf16.msra.mxu0 %v371
    %392 = vmatprep.subr.bf16.mxu0 0
    %393 = vmatpush1.bf16.msra.mxu0 %v372
    %394 = vmatprep.subr.bf16.mxu0 0
    %395 = vmatpush1.bf16.msra.mxu0 %v373
    %396 = vmatprep.subr.bf16.mxu0 0
    %397 = vmatpush1.bf16.msra.mxu0 %v374
    %398 = vmatprep.subr.bf16.mxu0 0
    %399 = vmatpush1.bf16.msra.mxu0 %v375
    %400 = vmatprep.subr.bf16.mxu0 0
    %401 = vmatpush1.bf16.msra.mxu0 0
    %402 = vmatprep.subr.bf16.mxu0 0
    %403 = vmatpush1.bf16.msra.mxu0 0
    %404 = vmatprep.subr.bf16.mxu0 0
    %405 = vmatpush1.bf16.msra.mxu0 0
    %406 = vmatprep.subr.bf16.mxu0 0
    %407 = vmatpush1.bf16.msra.mxu0 0
    %408 = vmatprep.subr.bf16.mxu0 0
    %409 = vmatpush1.bf16.msra.mxu0 0
    %410 = vmatprep.subr.bf16.mxu0 0
    %411 = vmatpush1.bf16.msra.mxu0 0
    %412 = vmatprep.subr.bf16.mxu0 0
    %413 = vmatpush1.bf16.msra.mxu0 0
    %414 = vmatprep.subr.bf16.mxu0 0
    %415 = vmatpush1.bf16.msra.mxu0 0
    %416 = vmatprep.mubr.bf16.mxu0 0
    %417 = vmatmul.mubr.bf16.gmra.mrb[0].mxu0 %v328
    %v418 = vpop.f32.mrb[0].mxu0
    %v419 = vadd.f32 %v335, %v418
    %v420 = vpop.f32.mrb[0].mxu0
    %v421 = vpop.f32.mrb[0].mxu0
    %v422 = vadd.f32 %v335, %v421
    %v423 = vpop.f32.mrb[0].mxu0
    %424 = vmatprep.mubr.bf16.mxu0 0
    %425 = vmatmul.mubr.bf16.gmra.mrb[0].mxu0 %v329
    %v426 = vpop.f32.mrb[0].mxu0
    %v427 = vadd.f32 %v335, %v426
    %v428 = vpop.f32.mrb[0].mxu0
    %v429 = vpop.f32.mrb[0].mxu0
    %v430 = vadd.f32 %v335, %v429
    %v431 = vpop.f32.mrb[0].mxu0
    %432 = vmatprep.mubr.bf16.mxu0 0
    %433 = vmatmul.mubr.bf16.gmra.mrb[0].mxu0 %v330
    %v434 = vpop.f32.mrb[0].mxu0
    %v435 = vadd.f32 %v335, %v434
    %v436 = vpop.f32.mrb[0].mxu0
    %v437 = vpop.f32.mrb[0].mxu0
    %v438 = vadd.f32 %v335, %v437
    %v439 = vpop.f32.mrb[0].mxu0
    %440 = vmatprep.mubr.bf16.mxu0 0
    %441 = vmatmul.mubr.bf16.gmra.mrb[0].mxu0 %v331
    %v442 = vpop.f32.mrb[0].mxu0
    %v443 = vadd.f32 %v335, %v442
    %v444 = vpop.f32.mrb[0].mxu0
    %v445 = vpop.f32.mrb[0].mxu0
    %v446 = vadd.f32 %v335, %v445
    %v447 = vpop.f32.mrb[0].mxu0
    %448 = vdwg.mxu0
    %v449 = vadd.f32 %v77, %v419
    %v450 = vadd.f32 %v78, %v422
    %v451 = vadd.f32 %v79, %v427
    %v452 = vadd.f32 %v80, %v430
    %v453 = vadd.f32 %v81, %v435
    %v454 = vadd.f32 %v82, %v438
    %v455 = vadd.f32 %v83, %v443
    %v456 = vadd.f32 %v84, %v446
    %457 = vadd.xlane.f32.xlu0 %v449
    %v458 = vpop.xlane.xlu0 %457
    %459 = vadd.xlane.f32.xlu0 %v450
    %v460 = vpop.xlane.xlu0 %459
    %461 = vadd.xlane.f32.xlu0 %v451
    %v462 = vpop.xlane.xlu0 %461
    %463 = vadd.xlane.f32.xlu0 %v452
    %v464 = vpop.xlane.xlu0 %463
    %465 = vadd.xlane.f32.xlu0 %v453
    %v466 = vpop.xlane.xlu0 %465
    %467 = vadd.xlane.f32.xlu0 %v454
    %v468 = vpop.xlane.xlu0 %467
    %469 = vadd.xlane.f32.xlu0 %v455
    %v470 = vpop.xlane.xlu0 %469
    %471 = vadd.xlane.f32.xlu0 %v456
    %v472 = vpop.xlane.xlu0 %471
    %v473 = vmul.f32 %v458, %v151
    %v474 = vmul.f32 %v460, %v151
    %v475 = vmul.f32 %v462, %v151
    %v476 = vmul.f32 %v464, %v151
    %v477 = vmul.f32 %v466, %v151
    %v478 = vmul.f32 %v468, %v151
    %v479 = vmul.f32 %v470, %v151
    %v480 = vmul.f32 %v472, %v151
    %v481 = vsub.f32 %v449, %v473
    %v482 = vsub.f32 %v450, %v474
    %v483 = vsub.f32 %v451, %v475
    %v484 = vsub.f32 %v452, %v476
    %v485 = vsub.f32 %v453, %v477
    %v486 = vsub.f32 %v454, %v478
    %v487 = vsub.f32 %v455, %v479
    %v488 = vsub.f32 %v456, %v480
    %v489 = vmul.f32 %v481, %v481
    %v490 = vmul.f32 %v482, %v482
    %v491 = vmul.f32 %v483, %v483
    %v492 = vmul.f32 %v484, %v484
    %v493 = vmul.f32 %v485, %v485
    %v494 = vmul.f32 %v486, %v486
    %v495 = vmul.f32 %v487, %v487
    %v496 = vmul.f32 %v488, %v488
    %497 = vadd.xlane.f32.xlu0 %v489
    %v498 = vpop.xlane.xlu0 %497
    %499 = vadd.xlane.f32.xlu0 %v490
    %v500 = vpop.xlane.xlu0 %499
    %501 = vadd.xlane.f32.xlu0 %v491
    %v502 = vpop.xlane.xlu0 %501
    %503 = vadd.xlane.f32.xlu0 %v492
    %v504 = vpop.xlane.xlu0 %503
    %505 = vadd.xlane.f32.xlu0 %v493
    %v506 = vpop.xlane.xlu0 %505
    %507 = vadd.xlane.f32.xlu0 %v494
    %v508 = vpop.xlane.xlu0 %507
    %509 = vadd.xlane.f32.xlu0 %v495
    %v510 = vpop.xlane.xlu0 %509
    %511 = vadd.xlane.f32.xlu0 %v496
    %v512 = vpop.xlane.xlu0 %511
    %v513 = vmul.f32 %v498, 0.007874016
    %v514 = vmul.f32 %v500, 0.007874016
    %v515 = vmul.f32 %v502, 0.007874016
    %v516 = vmul.f32 %v504, 0.007874016
    %v517 = vmul.f32 %v506, 0.007874016
    %v518 = vmul.f32 %v508, 0.007874016
    %v519 = vmul.f32 %v510, 0.007874016
    %v520 = vmul.f32 %v512, 0.007874016
    %v521 = vrsqrt.pop %v513
    %v522 = vmul.f32 %v513, %v521
    %vm523 = vcmp.eq.f32.partialorder %v513, inf
    %v524 = vsel %vm523, %v513, %v522
    %vm525 = vcmp.eq.f32.partialorder %v513, 0.0
    %v526 = vand.u32 %v513, 2147483648
    %v527 = vsel %vm525, %v526, %v524
    %v528 = vrsqrt.pop %v514
    %v529 = vmul.f32 %v514, %v528
    %vm530 = vcmp.eq.f32.partialorder %v514, inf
    %v531 = vsel %vm530, %v514, %v529
    %vm532 = vcmp.eq.f32.partialorder %v514, 0.0
    %v533 = vand.u32 %v514, 2147483648
    %v534 = vsel %vm532, %v533, %v531
    %v535 = vrsqrt.pop %v515
    %v536 = vmul.f32 %v515, %v535
    %vm537 = vcmp.eq.f32.partialorder %v515, inf
    %v538 = vsel %vm537, %v515, %v536
    %vm539 = vcmp.eq.f32.partialorder %v515, 0.0
    %v540 = vand.u32 %v515, 2147483648
    %v541 = vsel %vm539, %v540, %v538
    %v542 = vrsqrt.pop %v516
    %v543 = vmul.f32 %v516, %v542
    %vm544 = vcmp.eq.f32.partialorder %v516, inf
    %v545 = vsel %vm544, %v516, %v543
    %vm546 = vcmp.eq.f32.partialorder %v516, 0.0
    %v547 = vand.u32 %v516, 2147483648
    %v548 = vsel %vm546, %v547, %v545
    %v549 = vrsqrt.pop %v517
    %v550 = vmul.f32 %v517, %v549
    %vm551 = vcmp.eq.f32.partialorder %v517, inf
    %v552 = vsel %vm551, %v517, %v550
    %vm553 = vcmp.eq.f32.partialorder %v517, 0.0
    %v554 = vand.u32 %v517, 2147483648
    %v555 = vsel %vm553, %v554, %v552
    %v556 = vrsqrt.pop %v518
    %v557 = vmul.f32 %v518, %v556
    %vm558 = vcmp.eq.f32.partialorder %v518, inf
    %v559 = vsel %vm558, %v518, %v557
    %vm560 = vcmp.eq.f32.partialorder %v518, 0.0
    %v561 = vand.u32 %v518, 2147483648
    %v562 = vsel %vm560, %v561, %v559
    %v563 = vrsqrt.pop %v519
    %v564 = vmul.f32 %v519, %v563
    %vm565 = vcmp.eq.f32.partialorder %v519, inf
    %v566 = vsel %vm565, %v519, %v564
    %vm567 = vcmp.eq.f32.partialorder %v519, 0.0
    %v568 = vand.u32 %v519, 2147483648
    %v569 = vsel %vm567, %v568, %v566
    %v570 = vrsqrt.pop %v520
    %v571 = vmul.f32 %v520, %v570
    %vm572 = vcmp.eq.f32.partialorder %v520, inf
    %v573 = vsel %vm572, %v520, %v571
    %vm574 = vcmp.eq.f32.partialorder %v520, 0.0
    %v575 = vand.u32 %v520, 2147483648
    %v576 = vsel %vm574, %v575, %v573
    %v577 = vadd.f32 %v527, 1e-06
    %v578 = vadd.f32 %v534, 1e-06
    %v579 = vadd.f32 %v541, 1e-06
    %v580 = vadd.f32 %v548, 1e-06
    %v581 = vadd.f32 %v555, 1e-06
    %v582 = vadd.f32 %v562, 1e-06
    %v583 = vadd.f32 %v569, 1e-06
    %v584 = vadd.f32 %v576, 1e-06
    %v585 = vrcp.pop %v577
    %v586 = vmul.f32 1.0, %v585
    %v587 = vrcp.pop %v578
    %v588 = vmul.f32 1.0, %v587
    %v589 = vrcp.pop %v579
    %v590 = vmul.f32 1.0, %v589
    %v591 = vrcp.pop %v580
    %v592 = vmul.f32 1.0, %v591
    %v593 = vrcp.pop %v581
    %v594 = vmul.f32 1.0, %v593
    %v595 = vrcp.pop %v582
    %v596 = vmul.f32 1.0, %v595
    %v597 = vrcp.pop %v583
    %v598 = vmul.f32 1.0, %v597
    %v599 = vrcp.pop %v584
    %v600 = vmul.f32 1.0, %v599
    %v601 = vmul.f32 %v481, %v586
    %v602 = vmul.f32 %v482, %v588
    %v603 = vmul.f32 %v483, %v590
    %v604 = vmul.f32 %v484, %v592
    %v605 = vmul.f32 %v485, %v594
    %v606 = vmul.f32 %v486, %v596
    %v607 = vmul.f32 %v487, %v598
    %v608 = vmul.f32 %v488, %v600
    %v609 = vlaneseq
    %v610 = vshrl.u32 %v609, 7
    %v611 = vsub.s32 3, %v610
    %v612 = vrot.slane %v101, %v611
    %v613 = vmul.f32 %v612, %v601
    %v614 = vmul.f32 %v612, %v602
    %v615 = vmul.f32 %v612, %v603
    %v616 = vmul.f32 %v612, %v604
    %v617 = vmul.f32 %v612, %v605
    %v618 = vmul.f32 %v612, %v606
    %v619 = vmul.f32 %v612, %v607
    %v620 = vmul.f32 %v612, %v608
    %v621 = vlaneseq
    %v622 = vshrl.u32 %v621, 7
    %v623 = vsub.s32 4, %v622
    %v624 = vrot.slane %v101, %v623
    %v625 = vadd.f32 %v613, %v624
    %v626 = vadd.f32 %v614, %v624
    %v627 = vadd.f32 %v615, %v624
    %v628 = vadd.f32 %v616, %v624
    %v629 = vadd.f32 %v617, %v624
    %v630 = vadd.f32 %v618, %v624
    %v631 = vadd.f32 %v619, %v624
    %v632 = vadd.f32 %v620, %v624
    %v633 = vunpack.c.l.bf16 %v93
    %v634 = vunpack.c.l.bf16 %v94
    %v635 = vunpack.c.l.bf16 %v95
    %v636 = vunpack.c.l.bf16 %v96
    %v637 = vunpack.c.l.bf16 %v97
    %v638 = vunpack.c.l.bf16 %v98
    %v639 = vunpack.c.l.bf16 %v99
    %v640 = vunpack.c.l.bf16 %v100
    %v641 = vadd.f32 %v625, %v633
    %v642 = vadd.f32 %v626, %v634
    %v643 = vadd.f32 %v627, %v635
    %v644 = vadd.f32 %v628, %v636
    %v645 = vadd.f32 %v629, %v637
    %v646 = vadd.f32 %v630, %v638
    %v647 = vadd.f32 %v631, %v639
    %v648 = vadd.f32 %v632, %v640
    %v649 = vpack.c.bf16 %v642, %v641
    %v650 = vpack.c.bf16 %v644, %v643
    %v651 = vpack.c.bf16 %v646, %v645
    %v652 = vpack.c.bf16 %v648, %v647
    %v653 = vlaneseq
    %v654 = vshrl.u32 %v653, 7
    %v655 = vsub.s32 5, %v654
    %v656 = vrot.slane %v101, %v655
    %v673 = vunpack.c.l.b16 %v119
    %v674 = vunpack.c.l.b16 %v120
    %v675 = vunpack.c.l.b16 %v121
    %v676 = vunpack.c.l.b16 %v122
    %v677 = vunpack.c.l.b16 %v123
    %v678 = vunpack.c.l.b16 %v124
    %v679 = vunpack.c.l.b16 %v125
    %v680 = vunpack.c.l.b16 %v126
    %v681 = vunpack.c.l.b16 %v127
    %v682 = vunpack.c.l.b16 %v128
    %v683 = vunpack.c.l.b16 %v129
    %v684 = vunpack.c.l.b16 %v130
    %v685 = vunpack.c.l.b16 %v131
    %v686 = vunpack.c.l.b16 %v132
    %v687 = vunpack.c.l.b16 %v133
    %v688 = vunpack.c.l.b16 %v134
    %v689 = vpack.c.b16 %v674, %v673
    %v690 = vpack.c.b16 %v676, %v675
    %v691 = vpack.c.b16 %v678, %v677
    %v692 = vpack.c.b16 %v680, %v679
    %v693 = vpack.c.b16 %v682, %v681
    %v694 = vpack.c.b16 %v684, %v683
    %v695 = vpack.c.b16 %v686, %v685
    %v696 = vpack.c.b16 %v688, %v687
    %705 = vmatprep.subr.bf16.mxu0 0
    %706 = vmatpush1.bf16.msra.mxu0 %v689
    %707 = vmatprep.subr.bf16.mxu0 0
    %708 = vmatpush1.bf16.msra.mxu0 %v690
    %709 = vmatprep.subr.bf16.mxu0 0
    %710 = vmatpush1.bf16.msra.mxu0 %v691
    %711 = vmatprep.subr.bf16.mxu0 0
    %712 = vmatpush1.bf16.msra.mxu0 %v692
    %713 = vmatprep.subr.bf16.mxu0 0
    %714 = vmatpush1.bf16.msra.mxu0 %v693
    %715 = vmatprep.subr.bf16.mxu0 0
    %716 = vmatpush1.bf16.msra.mxu0 %v694
    %717 = vmatprep.subr.bf16.mxu0 0
    %718 = vmatpush1.bf16.msra.mxu0 %v695
    %719 = vmatprep.subr.bf16.mxu0 0
    %720 = vmatpush1.bf16.msra.mxu0 %v696
    %721 = vmatprep.subr.bf16.mxu0 0
    %722 = vmatpush1.bf16.msra.mxu0 0
    %723 = vmatprep.subr.bf16.mxu0 0
    %724 = vmatpush1.bf16.msra.mxu0 0
    %725 = vmatprep.subr.bf16.mxu0 0
    %726 = vmatpush1.bf16.msra.mxu0 0
    %727 = vmatprep.subr.bf16.mxu0 0
    %728 = vmatpush1.bf16.msra.mxu0 0
    %729 = vmatprep.subr.bf16.mxu0 0
    %730 = vmatpush1.bf16.msra.mxu0 0
    %731 = vmatprep.subr.bf16.mxu0 0
    %732 = vmatpush1.bf16.msra.mxu0 0
    %733 = vmatprep.subr.bf16.mxu0 0
    %734 = vmatpush1.bf16.msra.mxu0 0
    %735 = vmatprep.subr.bf16.mxu0 0
    %736 = vmatpush1.bf16.msra.mxu0 0
    %737 = vmatprep.mubr.bf16.mxu0 0
    %738 = vmatmul.mubr.bf16.gmra.mrb[0].mxu0 %v649
    %v739 = vpop.f32.mrb[0].mxu0
    %v740 = vadd.f32 %v656, %v739
    %v741 = vpop.f32.mrb[0].mxu0
    %v742 = vpop.f32.mrb[0].mxu0
    %v743 = vadd.f32 %v656, %v742
    %v744 = vpop.f32.mrb[0].mxu0
    %745 = vmatprep.mubr.bf16.mxu0 0
    %746 = vmatmul.mubr.bf16.gmra.mrb[0].mxu0 %v650
    %v747 = vpop.f32.mrb[0].mxu0
    %v748 = vadd.f32 %v656, %v747
    %v749 = vpop.f32.mrb[0].mxu0
    %v750 = vpop.f32.mrb[0].mxu0
    %v751 = vadd.f32 %v656, %v750
    %v752 = vpop.f32.mrb[0].mxu0
    %753 = vmatprep.mubr.bf16.mxu0 0
    %754 = vmatmul.mubr.bf16.gmra.mrb[0].mxu0 %v651
    %v755 = vpop.f32.mrb[0].mxu0
    %v756 = vadd.f32 %v656, %v755
    %v757 = vpop.f32.mrb[0].mxu0
    %v758 = vpop.f32.mrb[0].mxu0
    %v759 = vadd.f32 %v656, %v758
    %v760 = vpop.f32.mrb[0].mxu0
    %761 = vmatprep.mubr.bf16.mxu0 0
    %762 = vmatmul.mubr.bf16.gmra.mrb[0].mxu0 %v652
    %v763 = vpop.f32.mrb[0].mxu0
    %v764 = vadd.f32 %v656, %v763
    %v765 = vpop.f32.mrb[0].mxu0
    %v766 = vpop.f32.mrb[0].mxu0
    %v767 = vadd.f32 %v656, %v766
    %v768 = vpop.f32.mrb[0].mxu0
    %769 = vdwg.mxu0
    %v770 = vadd.f32 %v449, %v740
    %v771 = vadd.f32 %v450, %v743
    %v772 = vadd.f32 %v451, %v748
    %v773 = vadd.f32 %v452, %v751
    %v774 = vadd.f32 %v453, %v756
    %v775 = vadd.f32 %v454, %v759
    %v776 = vadd.f32 %v455, %v764
    %v777 = vadd.f32 %v456, %v767
    %778 = vst [vmem:[#allocation10] sm:$0xff] %v770
    %779 = vst [vmem:[#allocation10 + $0x8] sm:$0xff] %v771
    %780 = vst [vmem:[#allocation10 + $0x10] sm:$0xff] %v772
    %781 = vst [vmem:[#allocation10 + $0x18] sm:$0xff] %v773
    %782 = vst [vmem:[#allocation10 + $0x20] sm:$0xff] %v774
    %783 = vst [vmem:[#allocation10 + $0x28] sm:$0xff] %v775
    %784 = vst [vmem:[#allocation10 + $0x30] sm:$0xff] %v776
    %785 = vst [vmem:[#allocation10 + $0x38] sm:$0xff] %v777
    // Predicated region
    $region38: #{tpu_custom_call.1} parent=1 // pred_check
      _
    $region39: #{tpu_custom_call.1} parent=1 // pred_check_branch
      %787 = sbr.rel (0) target = $region41
    $region40: #{tpu_custom_call.1} parent=1 // pred_region
      %s789 = ssub.s32 1024, 1024
      %790 = vsyncadd [#allocation4], %s789
      %s791 = sshll.u32 [#allocation10], 4
      %s792 = int_to_ptr.vmem [resolvable:$true] %s791
      %797 = dma.vmem_to_hbm [thread:$0]  %s792, 1024, %s5, [#allocation4], 128, 128, 8
    $region41: #{tpu_custom_call.1} parent=1 // pred_fallthru
      _
    // Predicated region
    $region42: #{tpu_custom_call.1} parent=1 // pred_check
      _
    $region43: #{tpu_custom_call.1} parent=1 // pred_check_branch
      %799 = sbr.rel (0) target = $region45
    $region44: #{tpu_custom_call.1} parent=1 // pred_region
      %800 = dma.done [#allocation4], 1024
    $region45: #{tpu_custom_call.1} parent=1 // pred_fallthru
      _
    %801 = vsyncpa [#allocation3], 1
    %802 = vsyncpa [#allocation6], 1
    %803 = vsyncpa [#allocation9], 1
    %804 = vsyncpa [#allocation4], 1

</llo_original>
